<compile_context>
chip_gen: v7x
topology: tpu7x:2x2x1
jax: 0.10.0
libtpu: 0.0.40
codegen_flags: <defaults>
</compile_context>

<pallas_src>
import functools

import jax
import jax.numpy as jnp
from jax.experimental import pallas as pl
from jax.experimental.pallas import tpu as pltpu


def _round_up(x, m):
    return (x + m - 1) // m * m


def _mh_dueling_kernel(x_ref, w1_ref, b1_ref, w2_ref, b2_ref, wva_ref, bva_ref,
                       out_ref, *, n_actions):
    """One (head, batch-tile) grid step. All refs are squeezed over the head dim."""
    x = x_ref[...]                                                     # (TB, S)

    # l1 + relu
    h = jnp.dot(x, w1_ref[...], preferred_element_type=jnp.float32) + b1_ref[...]
    h = jnp.maximum(h, 0.0)                                            # (TB, D)

    # l2 + relu
    h = jnp.dot(h, w2_ref[...], preferred_element_type=jnp.float32) + b2_ref[...]
    h = jnp.maximum(h, 0.0)                                            # (TB, D)

    # Fused value/advantage head: column 0 = V, columns 1..A = advantage,
    # columns A+1..127 are EXACT zeros (zero weights + zero bias).
    o = jnp.dot(h, wva_ref[...], preferred_element_type=jnp.float32) + bva_ref[...]
    v = o[:, 0:1]                                                      # (TB, 1)
    total = jnp.sum(o, axis=-1, keepdims=True)                         # = V + sum(A)
    adv_mean = (total - v) * (1.0 / n_actions)                         # mean(A)

    # Lanes 1..A now hold Q = V + A - mean(A); the other lanes hold don't-care
    # values that the wrapper slices away.  Full 128-lane unmasked store.
    out_ref[...] = (o + (v - adv_mean)).astype(out_ref.dtype)


def multihead_dueling_q_forward(state, params, *, tile_b=512):
    """state: (B, total_heads, s_dim) -> Q: (B, total_heads, n_actions)."""
    w1, b1 = params["w1"], params["b1"]
    w2, b2 = params["w2"], params["b2"]
    wva, bva = params["wva"], params["bva"]
    H, S, D = w1.shape
    qpad = wva.shape[-1]
    A = params["wA"].shape[-1]
    B = state.shape[0]

    # Head-major layout so every grid step reads a contiguous (TILE_B, S) slab.
    x = jnp.transpose(state.astype(jnp.float32), (1, 0, 2))            # (H, B, S)
    tb = min(tile_b, _round_up(B, 8))
    b_pad = _round_up(B, tb)
    if b_pad != B:
        x = jnp.pad(x, ((0, 0), (0, b_pad - B), (0, 0)))
    nbt = b_pad // tb

    flops = 2 * b_pad * H * (S * D + D * D + D * qpad)
    bytes_accessed = 4 * (x.size + w1.size + b1.size + w2.size + b2.size
                          + wva.size + bva.size + H * b_pad * qpad)

    out = pl.pallas_call(
        functools.partial(_mh_dueling_kernel, n_actions=A),
        out_shape=jax.ShapeDtypeStruct((H, b_pad, qpad), jnp.float32),
        grid=(H, nbt),
        in_specs=[
            pl.BlockSpec((None, tb, S), lambda h, i: (h, i, 0)),       # state
            pl.BlockSpec((None, S, D), lambda h, i: (h, 0, 0)),        # W1
            pl.BlockSpec((None, 1, D), lambda h, i: (h, 0, 0)),        # b1
            pl.BlockSpec((None, D, D), lambda h, i: (h, 0, 0)),        # W2
            pl.BlockSpec((None, 1, D), lambda h, i: (h, 0, 0)),        # b2
            pl.BlockSpec((None, D, qpad), lambda h, i: (h, 0, 0)),     # fused V|A weights
            pl.BlockSpec((None, 1, qpad), lambda h, i: (h, 0, 0)),     # fused V|A bias
        ],
        out_specs=pl.BlockSpec((None, tb, qpad), lambda h, i: (h, i, 0)),
        compiler_params=pltpu.CompilerParams(
            dimension_semantics=("parallel", "parallel")),
        cost_estimate=pl.CostEstimate(
            flops=flops, transcendentals=0, bytes_accessed=bytes_accessed),
    )(x, w1, b1, w2, b2, wva, bva)

    # Q lives in lanes 1..A of the padded output; back to (B, H, A).
    return jnp.transpose(out[:, :B, 1:1 + A], (1, 0, 2))


def init_params(key, s_dim, n_actions, n_heads, hidden_dim=128, int_heads=False):
    """Weights stored as (heads, in_features, out_features); biases (heads, 1, out).
    The V/A heads are additionally packed host-side into one zero-padded,
    lane-dense (hidden, 128*k) slab used by the kernel."""
    total_heads = n_heads * (2 if int_heads else 1)
    qpad = _round_up(1 + n_actions, 128)
    ks = jax.random.split(key, 8)

    def u(k, shape, fan_in):
        bound = 1.0 / jnp.sqrt(fan_in)
        return jax.random.uniform(k, shape, jnp.float32, -bound, bound)

    w1 = u(ks[0], (total_heads, s_dim, hidden_dim), s_dim)
    b1 = u(ks[1], (total_heads, 1, hidden_dim), s_dim)
    w2 = u(ks[2], (total_heads, hidden_dim, hidden_dim), hidden_dim)
    b2 = u(ks[3], (total_heads, 1, hidden_dim), hidden_dim)
    # (module uses orthogonal(0.01) + zero bias for lV/lA; small random values
    #  here exercise the same forward math)
    wV = 0.01 * u(ks[4], (total_heads, hidden_dim, 1), hidden_dim)
    bV = 0.01 * u(ks[5], (total_heads, 1, 1), hidden_dim)
    wA = 0.01 * u(ks[6], (total_heads, hidden_dim, n_actions), hidden_dim)
    bA = 0.01 * u(ks[7], (total_heads, 1, n_actions), hidden_dim)

    # Host-side fusion of the two heads: col 0 = V, cols 1..A = advantage,
    # cols A+1.. exactly zero (the kernel relies on this for the adv mean).
    wva = jnp.zeros((total_heads, hidden_dim, qpad), jnp.float32)
    wva = wva.at[:, :, 0:1].set(wV).at[:, :, 1:1 + n_actions].set(wA)
    bva = jnp.zeros((total_heads, 1, qpad), jnp.float32)
    bva = bva.at[:, :, 0:1].set(bV).at[:, :, 1:1 + n_actions].set(bA)

    return dict(w1=w1, b1=b1, w2=w2, b2=b2,
                wV=wV, bV=bV, wA=wA, bA=bA,
                wva=wva, bva=bva)


def reference_forward(state, p):
    """Pure-JAX reference matching the PyTorch forward (per-head parallel_Linear)."""
    x = jnp.einsum("bhs,hsd->bhd", state, p["w1"]) + p["b1"][None, :, 0, :]
    x = jax.nn.relu(x)
    x = jnp.einsum("bhd,hde->bhe", x, p["w2"]) + p["b2"][None, :, 0, :]
    x = jax.nn.relu(x)
    V = jnp.einsum("bhd,hdk->bhk", x, p["wV"]) + p["bV"][None, :, 0, :]
    A = jnp.einsum("bhd,hda->bha", x, p["wA"]) + p["bA"][None, :, 0, :]
    return V + A - jnp.mean(A, axis=2, keepdims=True)


if __name__ == "__main__":
    # Small shapes consistent with the module.
    batch = 16
    s_dim = 8
    n_actions = 4
    n_heads = 2
    int_heads = False
    hidden_dim = 128

    total_heads = n_heads * (2 if int_heads else 1)

    key = jax.random.PRNGKey(0)
    k_params, k_state = jax.random.split(key)
    params = init_params(k_params, s_dim, n_actions, n_heads, hidden_dim, int_heads)
    state = jax.random.normal(k_state, (batch, total_heads, s_dim), jnp.float32)

    q = multihead_dueling_q_forward(state, params)
    q = jax.block_until_ready(q)

    ref = reference_forward(state, params)
    assert q.shape == (batch, total_heads, n_actions), q.shape
    max_err = float(jnp.max(jnp.abs(q - ref)))
    assert jnp.allclose(q, ref, atol=1e-4, rtol=1e-4), f"mismatch vs reference: {max_err}"

    # TODO(synk): weights_init_rnd / orthogonal init and the Adam optimizer are
    # training-time setup, not part of the forward pass, so they are not ported.
    print("KERNEL_OK")
</pallas_src>

<mosaic_0001>
module attributes {stable_mosaic.version = 11 : i64} {
  func.func @_mh_dueling_kernel(%arg0: i32, %arg1: i32, %arg2: memref<1x16x8xf32, #tpu.memory_space<vmem>>, %arg3: memref<1x8x128xf32, #tpu.memory_space<vmem>>, %arg4: memref<1x1x128xf32, #tpu.memory_space<vmem>>, %arg5: memref<1x128x128xf32, #tpu.memory_space<vmem>>, %arg6: memref<1x1x128xf32, #tpu.memory_space<vmem>>, %arg7: memref<1x128x128xf32, #tpu.memory_space<vmem>>, %arg8: memref<1x1x128xf32, #tpu.memory_space<vmem>>, %arg9: memref<1x16x128xf32, #tpu.memory_space<vmem>>) attributes {dimension_semantics = [#tpu.dimension_semantics<parallel>, #tpu.dimension_semantics<parallel>], iteration_bounds = array<i64: 2, 1>, scalar_prefetch = 0 : i64, scratch_operands = 0 : i64, tpu.core_type = #tpu.core_type<tc>, window_params = [{transform_indices = @transform_0, window_bounds = array<i64: 1, 16, 8>}, {transform_indices = @transform_1, window_bounds = array<i64: 1, 8, 128>}, {transform_indices = @transform_2, window_bounds = array<i64: 1, 1, 128>}, {transform_indices = @transform_3, window_bounds = array<i64: 1, 128, 128>}, {transform_indices = @transform_4, window_bounds = array<i64: 1, 1, 128>}, {transform_indices = @transform_5, window_bounds = array<i64: 1, 128, 128>}, {transform_indices = @transform_6, window_bounds = array<i64: 1, 1, 128>}, {transform_indices = @transform_7, window_bounds = array<i64: 1, 16, 128>}]} {
    %c0 = arith.constant 0 : index
    %c0_0 = arith.constant 0 : index
    %c0_1 = arith.constant 0 : index
    %0 = vector.load %arg2[%c0, %c0_0, %c0_1] : memref<1x16x8xf32, #tpu.memory_space<vmem>>, vector<1x16x8xf32>
    %1 = vector.shape_cast %0 : vector<1x16x8xf32> to vector<16x8xf32>
    %c0_2 = arith.constant 0 : index
    %c0_3 = arith.constant 0 : index
    %c0_4 = arith.constant 0 : index
    %2 = vector.load %arg3[%c0_2, %c0_3, %c0_4] : memref<1x8x128xf32, #tpu.memory_space<vmem>>, vector<1x8x128xf32>
    %3 = vector.shape_cast %2 : vector<1x8x128xf32> to vector<8x128xf32>
    %cst = arith.constant dense<0.000000e+00> : vector<16x128xf32>
    %4 = tpu.matmul %1, %3, %cst {dimension_numbers = #tpu.dot_dimension_numbers<[1], [0], [0], [1], [0, 0, 1, 1], [], []>} : vector<16x8xf32>, vector<8x128xf32>, vector<16x128xf32> -> vector<16x128xf32>
    %c0_5 = arith.constant 0 : index
    %c0_6 = arith.constant 0 : index
    %c0_7 = arith.constant 0 : index
    %5 = vector.load %arg4[%c0_5, %c0_6, %c0_7] : memref<1x1x128xf32, #tpu.memory_space<vmem>>, vector<1x1x128xf32>
    %6 = vector.shape_cast %5 : vector<1x1x128xf32> to vector<1x128xf32>
    %7 = vector.broadcast %6 : vector<1x128xf32> to vector<16x128xf32>
    %8 = arith.addf %4, %7 : vector<16x128xf32>
    %cst_8 = arith.constant 0.000000e+00 : f32
    %9 = vector.broadcast %cst_8 : f32 to vector<16x128xf32>
    %10 = arith.maximumf %8, %9 : vector<16x128xf32>
    %c0_9 = arith.constant 0 : index
    %c0_10 = arith.constant 0 : index
    %c0_11 = arith.constant 0 : index
    %11 = vector.load %arg5[%c0_9, %c0_10, %c0_11] : memref<1x128x128xf32, #tpu.memory_space<vmem>>, vector<1x128x128xf32>
    %12 = vector.shape_cast %11 : vector<1x128x128xf32> to vector<128x128xf32>
    %cst_12 = arith.constant dense<0.000000e+00> : vector<16x128xf32>
    %13 = tpu.matmul %10, %12, %cst_12 {dimension_numbers = #tpu.dot_dimension_numbers<[1], [0], [0], [1], [0, 0, 1, 1], [], []>} : vector<16x128xf32>, vector<128x128xf32>, vector<16x128xf32> -> vector<16x128xf32>
    %c0_13 = arith.constant 0 : index
    %c0_14 = arith.constant 0 : index
    %c0_15 = arith.constant 0 : index
    %14 = vector.load %arg6[%c0_13, %c0_14, %c0_15] : memref<1x1x128xf32, #tpu.memory_space<vmem>>, vector<1x1x128xf32>
    %15 = vector.shape_cast %14 : vector<1x1x128xf32> to vector<1x128xf32>
    %16 = vector.broadcast %15 : vector<1x128xf32> to vector<16x128xf32>
    %17 = arith.addf %13, %16 : vector<16x128xf32>
    %cst_16 = arith.constant 0.000000e+00 : f32
    %18 = vector.broadcast %cst_16 : f32 to vector<16x128xf32>
    %19 = arith.maximumf %17, %18 : vector<16x128xf32>
    %c0_17 = arith.constant 0 : index
    %c0_18 = arith.constant 0 : index
    %c0_19 = arith.constant 0 : index
    %20 = vector.load %arg7[%c0_17, %c0_18, %c0_19] : memref<1x128x128xf32, #tpu.memory_space<vmem>>, vector<1x128x128xf32>
    %21 = vector.shape_cast %20 : vector<1x128x128xf32> to vector<128x128xf32>
    %cst_20 = arith.constant dense<0.000000e+00> : vector<16x128xf32>
    %22 = tpu.matmul %19, %21, %cst_20 {dimension_numbers = #tpu.dot_dimension_numbers<[1], [0], [0], [1], [0, 0, 1, 1], [], []>} : vector<16x128xf32>, vector<128x128xf32>, vector<16x128xf32> -> vector<16x128xf32>
    %c0_21 = arith.constant 0 : index
    %c0_22 = arith.constant 0 : index
    %c0_23 = arith.constant 0 : index
    %23 = vector.load %arg8[%c0_21, %c0_22, %c0_23] : memref<1x1x128xf32, #tpu.memory_space<vmem>>, vector<1x1x128xf32>
    %24 = vector.shape_cast %23 : vector<1x1x128xf32> to vector<1x128xf32>
    %25 = vector.broadcast %24 : vector<1x128xf32> to vector<16x128xf32>
    %26 = arith.addf %22, %25 : vector<16x128xf32>
    %27 = vector.extract_strided_slice %26 {offsets = [0, 0], sizes = [16, 1], strides = [1, 1]} : vector<16x128xf32> to vector<16x1xf32>
    %cst_24 = arith.constant dense<0.000000e+00> : vector<16xf32>
    %28 = vector.multi_reduction <add>, %26, %cst_24 [1] : vector<16x128xf32> to vector<16xf32>
    %29 = vector.shape_cast %28 : vector<16xf32> to vector<16x1xf32>
    %30 = arith.subf %29, %27 : vector<16x1xf32>
    %cst_25 = arith.constant 2.500000e-01 : f32
    %31 = vector.broadcast %cst_25 : f32 to vector<16x1xf32>
    %32 = arith.mulf %30, %31 : vector<16x1xf32>
    %33 = arith.subf %27, %32 : vector<16x1xf32>
    %34 = vector.broadcast %33 : vector<16x1xf32> to vector<16x128xf32>
    %35 = arith.addf %26, %34 : vector<16x128xf32>
    %c0_26 = arith.constant 0 : index
    %c0_27 = arith.constant 0 : index
    %c0_28 = arith.constant 0 : index
    %36 = vector.load %arg9[%c0_26, %c0_27, %c0_28] : memref<1x16x128xf32, #tpu.memory_space<vmem>>, vector<1x16x128xf32>
    %37 = vector.shape_cast %36 : vector<1x16x128xf32> to vector<16x128xf32>
    %38 = vector.shape_cast %35 : vector<16x128xf32> to vector<1x16x128xf32>
    tpu.vector_store %arg9[%c0_26, %c0_27, %c0_28], %38 {strides = array<i32>} : memref<1x16x128xf32, #tpu.memory_space<vmem>>, vector<1x16x128xf32>,
    return
  }
  func.func @transform_0(%arg0: i32, %arg1: i32) -> (i32, i32, i32) {
    %c0_i32 = arith.constant 0 : i32
    %c0_i32_0 = arith.constant 0 : i32
    return %arg0, %arg1, %c0_i32 : i32, i32, i32
  }
  func.func @transform_1(%arg0: i32, %arg1: i32) -> (i32, i32, i32) {
    %c0_i32 = arith.constant 0 : i32
    %c0_i32_0 = arith.constant 0 : i32
    %c0_i32_1 = arith.constant 0 : i32
    return %arg0, %c0_i32, %c0_i32_0 : i32, i32, i32
  }
  func.func @transform_2(%arg0: i32, %arg1: i32) -> (i32, i32, i32) {
    %c0_i32 = arith.constant 0 : i32
    %c0_i32_0 = arith.constant 0 : i32
    %c0_i32_1 = arith.constant 0 : i32
    return %arg0, %c0_i32, %c0_i32_0 : i32, i32, i32
  }
  func.func @transform_3(%arg0: i32, %arg1: i32) -> (i32, i32, i32) {
    %c0_i32 = arith.constant 0 : i32
    %c0_i32_0 = arith.constant 0 : i32
    %c0_i32_1 = arith.constant 0 : i32
    return %arg0, %c0_i32, %c0_i32_0 : i32, i32, i32
  }
  func.func @transform_4(%arg0: i32, %arg1: i32) -> (i32, i32, i32) {
    %c0_i32 = arith.constant 0 : i32
    %c0_i32_0 = arith.constant 0 : i32
    %c0_i32_1 = arith.constant 0 : i32
    return %arg0, %c0_i32, %c0_i32_0 : i32, i32, i32
  }
  func.func @transform_5(%arg0: i32, %arg1: i32) -> (i32, i32, i32) {
    %c0_i32 = arith.constant 0 : i32
    %c0_i32_0 = arith.constant 0 : i32
    %c0_i32_1 = arith.constant 0 : i32
    return %arg0, %c0_i32, %c0_i32_0 : i32, i32, i32
  }
  func.func @transform_6(%arg0: i32, %arg1: i32) -> (i32, i32, i32) {
    %c0_i32 = arith.constant 0 : i32
    %c0_i32_0 = arith.constant 0 : i32
    %c0_i32_1 = arith.constant 0 : i32
    return %arg0, %c0_i32, %c0_i32_0 : i32, i32, i32
  }
  func.func @transform_7(%arg0: i32, %arg1: i32) -> (i32, i32, i32) {
    %c0_i32 = arith.constant 0 : i32
    %c0_i32_0 = arith.constant 0 : i32
    return %arg0, %arg1, %c0_i32 : i32, i32, i32
  }
}

</mosaic_0001>

<llo_original>
// kernel: tpu_custom_call.1
$region0: #{tpu_custom_call.1}
  #allocation0 [shape = 'u32[]', space=smem, size = 0x4, offset = 0x4, fixed_abs, tag = 'smem constant byte address 0x4 - core index']
  #allocation1 [shape = 'u32[144,128]{1,0:T(1,128)}', space=vmem, size = 0x12000, scoped, tag = 'internal scratch']
  %s0 = inlined_call_operand.vmem [shape: f32[2,16,8], index: 0, kind: input, shape index: {}]
  %s1 = inlined_call_operand.vmem [shape: f32[2,8,128], index: 1, kind: input, shape index: {}]
  %s2 = inlined_call_operand.vmem [shape: f32[2,1,128], index: 2, kind: input, shape index: {}]
  %s3 = inlined_call_operand.hbm [shape: f32[2,128,128], index: 3, kind: input, shape index: {}]
  %s4 = inlined_call_operand.vmem [shape: f32[2,1,128], index: 4, kind: input, shape index: {}]
  %s5 = inlined_call_operand.hbm [shape: f32[2,128,128], index: 5, kind: input, shape index: {}]
  %s6 = inlined_call_operand.vmem [shape: f32[2,1,128], index: 6, kind: input, shape index: {}]
  %s7 = inlined_call_operand.hbm [shape: f32[2,16,128], index: 7, kind: output, shape index: {}]
  %s8 = sld [smem:[#allocation0]]
  $region69: #{tpu_custom_call.1} parent=0
    _
  %s10 = ssub.s32 1, %s8
  %s11 = scalar_select 0, %s10, %s8
  $region1: #{tpu_custom_call.1} parent=0
    #allocation2 [shape = 'u8[131072]{0}', space=vmem, size = 0x20000, scoped, tag = 'input window, operand 3']
    #allocation3 [shape = 's32[2]{0}', space=sflag, size = 0x8, scoped, tag = 'scoped memory for tpu_custom_call.1']
    #allocation4 [shape = 's32[2]{0}', space=sflag, size = 0x8, scoped, tag = 'scoped memory for tpu_custom_call.1']
    #allocation5 [shape = 'u8[131072]{0}', space=vmem, size = 0x20000, scoped, tag = 'input window, operand 5']
    #allocation6 [shape = 's32[2]{0}', space=sflag, size = 0x8, scoped, tag = 'scoped memory for tpu_custom_call.1']
    #allocation7 [shape = 'u8[16384]{0}', space=vmem, size = 0x4000, scoped, tag = 'output window, operand 0']
    %12 = vsyncpa [#allocation3], 0
    %s13 = scalar_lea.sflag [#allocation3], 1
    %14 = vsyncpa %s13, 0
    %15 = vsyncpa [#allocation6], 0
    %s16 = scalar_lea.sflag [#allocation6], 1
    %17 = vsyncpa %s16, 0
    %18 = vsyncpa [#allocation4], 0
    %s19 = scalar_lea.sflag [#allocation4], 1
    %20 = vsyncpa %s19, 0
    loop: start=0, step=1, limit=4
    $region2: #{tpu_custom_call.1} parent=1 // loop_pre_header
      _
    $region3: #{tpu_custom_call.1} parent=1 // loop_header
      %s22 = sphi 0, %s26
      %p23 = scmp.ge.s32.totalorder %s22, 4
      %s29 = sphi 0, %s41
      %s30 = sphi 0, %s37
      %s31 = sphi 0, %s29
      %s32 = sphi 0, %s30
      %s33 = sphi 0, %s31
      %s34 = sphi 0, %s32
      %s46 = sphi 0, %s48
      %s49 = sphi 0, %s46
      %s50 = sphi 0, %s49
      %s66 = sphi 0, %s50
      %s72 = sphi 0, %s74
      %s75 = sphi 0, %s72
      %s76 = sphi 0, %s75
      %s92 = sphi 0, %s76
      %s98 = sphi 0, %s100
      %s101 = sphi 0, %s98
      %s102 = sphi 0, %s101
      %s118 = sphi 0, %s102
      %s124 = sphi 0, %s126
      %s127 = sphi 0, %s124
      %s128 = sphi 0, %s127
      %s144 = sphi 0, %s128
      %s150 = sphi 0, %s152
      %s153 = sphi 0, %s150
      %s154 = sphi 0, %s153
      %s170 = sphi 0, %s154
      %s176 = sphi 0, %s178
      %s179 = sphi 0, %s176
      %s180 = sphi 0, %s179
      %s196 = sphi 0, %s180
      %s202 = sphi 0, %s204
      %s205 = sphi 0, %s202
      %s206 = sphi 0, %s205
      %s222 = sphi 0, %s206
      %s230 = sphi 0, %s232
      %s233 = sphi 0, %s230
      %s234 = sphi 0, %s233
      %s250 = sphi 0, %s234
    $region4: #{tpu_custom_call.1} parent=1 // loop_header_branch
      %25 = sbr.rel (%p23) target = $region8
    $region5: #{tpu_custom_call.1} parent=1 // loop_body
      %s27 = ssub.s32 %s22, 1
      %s28 = ssub.s32 %s22, 2
      %s35 = sadd.s32 1, %s30
      %p36 = scmp.ge.s32.totalorder %s35, 1
      %s37 = scalar_select %p36, 0, %s35
      %s38 = sadd.s32 1, %s29
      %s39 = scalar_select %p36, %s38, %s29
      %p40 = scmp.ge.s32.totalorder %s39, 2
      %s41 = scalar_select %p40, 0, %s39
      %s42 = ssub.s32 %s29, %s41
      %s43 = ssub.s32 %s30, %s37
      %s44 = sor.u32 %s42, %s43
      %p45 = scmp.eq.s32.totalorder %s44, 0
      %s47 = sadd.s32 %s46, 1
      %s48 = scalar_select %p45, %s46, %s47
      %p51 = pneg %p45
      %p52 = scmp.eq.s32.totalorder %s22, 1
      %p53 = por %p51, %p52
      %p54 = scmp.ne.s32.totalorder %s46, %s49
      %p55 = scmp.eq.s32.totalorder %s22, 0
      %p56 = por %p54, %p55
      %p57 = scmp.ne.s32.totalorder %s46, %s49
      %p58 = scmp.eq.s32.totalorder %s27, 1
      %p59 = por %p57, %p58
      %p60 = scmp.ne.s32.totalorder %s49, %s50
      %p61 = scmp.eq.s32.totalorder %s27, 0
      %p62 = por %p60, %p61
      %p63 = scmp.ne.s32.totalorder %s49, %s50
      %p64 = scmp.eq.s32.totalorder %s28, 1
      %p65 = por %p63, %p64
      %p67 = scmp.ne.s32.totalorder %s50, %s66
      %p68 = scmp.eq.s32.totalorder %s28, 0
      %p69 = por %p67, %p68
      %s70 = ssub.s32 %s29, %s41
      %p71 = scmp.eq.s32.totalorder %s70, 0
      %s73 = sadd.s32 %s72, 1
      %s74 = scalar_select %p71, %s72, %s73
      %p77 = pneg %p71
      %p78 = scmp.eq.s32.totalorder %s22, 1
      %p79 = por %p77, %p78
      %p80 = scmp.ne.s32.totalorder %s72, %s75
      %p81 = scmp.eq.s32.totalorder %s22, 0
      %p82 = por %p80, %p81
      %p83 = scmp.ne.s32.totalorder %s72, %s75
      %p84 = scmp.eq.s32.totalorder %s27, 1
      %p85 = por %p83, %p84
      %p86 = scmp.ne.s32.totalorder %s75, %s76
      %p87 = scmp.eq.s32.totalorder %s27, 0
      %p88 = por %p86, %p87
      %p89 = scmp.ne.s32.totalorder %s75, %s76
      %p90 = scmp.eq.s32.totalorder %s28, 1
      %p91 = por %p89, %p90
      %p93 = scmp.ne.s32.totalorder %s76, %s92
      %p94 = scmp.eq.s32.totalorder %s28, 0
      %p95 = por %p93, %p94
      %s96 = ssub.s32 %s29, %s41
      %p97 = scmp.eq.s32.totalorder %s96, 0
      %s99 = sadd.s32 %s98, 1
      %s100 = scalar_select %p97, %s98, %s99
      %p103 = pneg %p97
      %p104 = scmp.eq.s32.totalorder %s22, 1
      %p105 = por %p103, %p104
      %p106 = scmp.ne.s32.totalorder %s98, %s101
      %p107 = scmp.eq.s32.totalorder %s22, 0
      %p108 = por %p106, %p107
      %p109 = scmp.ne.s32.totalorder %s98, %s101
      %p110 = scmp.eq.s32.totalorder %s27, 1
      %p111 = por %p109, %p110
      %p112 = scmp.ne.s32.totalorder %s101, %s102
      %p113 = scmp.eq.s32.totalorder %s27, 0
      %p114 = por %p112, %p113
      %p115 = scmp.ne.s32.totalorder %s101, %s102
      %p116 = scmp.eq.s32.totalorder %s28, 1
      %p117 = por %p115, %p116
      %p119 = scmp.ne.s32.totalorder %s102, %s118
      %p120 = scmp.eq.s32.totalorder %s28, 0
      %p121 = por %p119, %p120
      %s122 = ssub.s32 %s29, %s41
      %p123 = scmp.eq.s32.totalorder %s122, 0
      %s125 = sadd.s32 %s124, 1
      %s126 = scalar_select %p123, %s124, %s125
      %p129 = pneg %p123
      %p130 = scmp.eq.s32.totalorder %s22, 1
      %p131 = por %p129, %p130
      %p132 = scmp.ne.s32.totalorder %s124, %s127
      %p133 = scmp.eq.s32.totalorder %s22, 0
      %p134 = por %p132, %p133
      %p135 = scmp.ne.s32.totalorder %s124, %s127
      %p136 = scmp.eq.s32.totalorder %s27, 1
      %p137 = por %p135, %p136
      %p138 = scmp.ne.s32.totalorder %s127, %s128
      %p139 = scmp.eq.s32.totalorder %s27, 0
      %p140 = por %p138, %p139
      %p141 = scmp.ne.s32.totalorder %s127, %s128
      %p142 = scmp.eq.s32.totalorder %s28, 1
      %p143 = por %p141, %p142
      %p145 = scmp.ne.s32.totalorder %s128, %s144
      %p146 = scmp.eq.s32.totalorder %s28, 0
      %p147 = por %p145, %p146
      %s148 = ssub.s32 %s29, %s41
      %p149 = scmp.eq.s32.totalorder %s148, 0
      %s151 = sadd.s32 %s150, 1
      %s152 = scalar_select %p149, %s150, %s151
      %p155 = pneg %p149
      %p156 = scmp.eq.s32.totalorder %s22, 1
      %p157 = por %p155, %p156
      %p158 = scmp.ne.s32.totalorder %s150, %s153
      %p159 = scmp.eq.s32.totalorder %s22, 0
      %p160 = por %p158, %p159
      %p161 = scmp.ne.s32.totalorder %s150, %s153
      %p162 = scmp.eq.s32.totalorder %s27, 1
      %p163 = por %p161, %p162
      %p164 = scmp.ne.s32.totalorder %s153, %s154
      %p165 = scmp.eq.s32.totalorder %s27, 0
      %p166 = por %p164, %p165
      %p167 = scmp.ne.s32.totalorder %s153, %s154
      %p168 = scmp.eq.s32.totalorder %s28, 1
      %p169 = por %p167, %p168
      %p171 = scmp.ne.s32.totalorder %s154, %s170
      %p172 = scmp.eq.s32.totalorder %s28, 0
      %p173 = por %p171, %p172
      %s174 = ssub.s32 %s29, %s41
      %p175 = scmp.eq.s32.totalorder %s174, 0
      %s177 = sadd.s32 %s176, 1
      %s178 = scalar_select %p175, %s176, %s177
      %p181 = pneg %p175
      %p182 = scmp.eq.s32.totalorder %s22, 1
      %p183 = por %p181, %p182
      %p184 = scmp.ne.s32.totalorder %s176, %s179
      %p185 = scmp.eq.s32.totalorder %s22, 0
      %p186 = por %p184, %p185
      %p187 = scmp.ne.s32.totalorder %s176, %s179
      %p188 = scmp.eq.s32.totalorder %s27, 1
      %p189 = por %p187, %p188
      %p190 = scmp.ne.s32.totalorder %s179, %s180
      %p191 = scmp.eq.s32.totalorder %s27, 0
      %p192 = por %p190, %p191
      %p193 = scmp.ne.s32.totalorder %s179, %s180
      %p194 = scmp.eq.s32.totalorder %s28, 1
      %p195 = por %p193, %p194
      %p197 = scmp.ne.s32.totalorder %s180, %s196
      %p198 = scmp.eq.s32.totalorder %s28, 0
      %p199 = por %p197, %p198
      %s200 = ssub.s32 %s29, %s41
      %p201 = scmp.eq.s32.totalorder %s200, 0
      %s203 = sadd.s32 %s202, 1
      %s204 = scalar_select %p201, %s202, %s203
      %p207 = pneg %p201
      %p208 = scmp.eq.s32.totalorder %s22, 1
      %p209 = por %p207, %p208
      %p210 = scmp.ne.s32.totalorder %s202, %s205
      %p211 = scmp.eq.s32.totalorder %s22, 0
      %p212 = por %p210, %p211
      %p213 = scmp.ne.s32.totalorder %s202, %s205
      %p214 = scmp.eq.s32.totalorder %s27, 1
      %p215 = por %p213, %p214
      %p216 = scmp.ne.s32.totalorder %s205, %s206
      %p217 = scmp.eq.s32.totalorder %s27, 0
      %p218 = por %p216, %p217
      %p219 = scmp.ne.s32.totalorder %s205, %s206
      %p220 = scmp.eq.s32.totalorder %s28, 1
      %p221 = por %p219, %p220
      %p223 = scmp.ne.s32.totalorder %s206, %s222
      %p224 = scmp.eq.s32.totalorder %s28, 0
      %p225 = por %p223, %p224
      %s226 = ssub.s32 %s29, %s41
      %s227 = ssub.s32 %s30, %s37
      %s228 = sor.u32 %s226, %s227
      %p229 = scmp.eq.s32.totalorder %s228, 0
      %s231 = sadd.s32 %s230, 1
      %s232 = scalar_select %p229, %s230, %s231
      %p235 = pneg %p229
      %p236 = scmp.eq.s32.totalorder %s22, 1
      %p237 = por %p235, %p236
      %p238 = scmp.ne.s32.totalorder %s230, %s233
      %p239 = scmp.eq.s32.totalorder %s22, 0
      %p240 = por %p238, %p239
      %p241 = scmp.ne.s32.totalorder %s230, %s233
      %p242 = scmp.eq.s32.totalorder %s27, 1
      %p243 = por %p241, %p242
      %p244 = scmp.ne.s32.totalorder %s233, %s234
      %p245 = scmp.eq.s32.totalorder %s27, 0
      %p246 = por %p244, %p245
      %p247 = scmp.ne.s32.totalorder %s233, %s234
      %p248 = scmp.eq.s32.totalorder %s28, 1
      %p249 = por %p247, %p248
      %p251 = scmp.ne.s32.totalorder %s234, %s250
      %p252 = scmp.eq.s32.totalorder %s28, 0
      %p253 = por %p251, %p252
      %p254 = scmp.le.s32.totalorder 1, %s22
      %p255 = scmp.lt.s32.totalorder %s22, 3
      %p256 = pnand %p254, %p255
      %p257 = pneg %p256
      // Predicated region
      $region9: #{tpu_custom_call.1} parent=5 // pred_check
        _
      $region10: #{tpu_custom_call.1} parent=5 // pred_check_branch
        %259 = sbr.rel (%p256) target = $region12
      $region11: #{tpu_custom_call.1} parent=5 // pred_region
        %s260 = ssub.s32 %s22, 1
      $region12: #{tpu_custom_call.1} parent=5 // pred_fallthru
        _
      %p261 = scmp.lt.s32.totalorder %s22, 2
      // Predicated region
      $region13: #{tpu_custom_call.1} parent=5 // pred_check
        %p262 = pneg %p261
      $region14: #{tpu_custom_call.1} parent=5 // pred_check_branch
        %264 = sbr.rel (%p262) target = $region16
      $region15: #{tpu_custom_call.1} parent=5 // pred_region
        // Predicated region
        $region17: #{tpu_custom_call.1} parent=15 // pred_check
          %p265 = pneg %p56
        $region18: #{tpu_custom_call.1} parent=15 // pred_check_branch
          %267 = sbr.rel (%p265) target = $region20
        $region19: #{tpu_custom_call.1} parent=15 // pred_region
          %s268 = smul.u32 2, %s30
          %p269 = scmp.lt.s32.totalorder %s29, 1
          %s270 = scalar_select %p269, %s29, 1
          %p271 = scmp.lt.s32.totalorder %s268, 1
          %s272 = scalar_select %p271, %s268, 1
          %s273 = smul.addr %s270, 2
          %s274 = sadd.s32 %s272, %s273
          %s275 = smul.addr %s274, 8
          %s276 = scalar_lea.vmem %s0, %s275
          %s277 = smul.u32 2, %s30
        $region20: #{tpu_custom_call.1} parent=15 // pred_fallthru
          _
        // Predicated region
        $region21: #{tpu_custom_call.1} parent=15 // pred_check
          %p278 = pneg %p82
        $region22: #{tpu_custom_call.1} parent=15 // pred_check_branch
          %280 = sbr.rel (%p278) target = $region24
        $region23: #{tpu_custom_call.1} parent=15 // pred_region
          %p281 = scmp.lt.s32.totalorder %s29, 1
          %s282 = scalar_select %p281, %s29, 1
          %s283 = smul.addr %s282, 8
          %s284 = scalar_lea.vmem %s1, %s283
        $region24: #{tpu_custom_call.1} parent=15 // pred_fallthru
          _
        // Predicated region
        $region25: #{tpu_custom_call.1} parent=15 // pred_check
          %p285 = pneg %p108
        $region26: #{tpu_custom_call.1} parent=15 // pred_check_branch
          %287 = sbr.rel (%p285) target = $region28
        $region27: #{tpu_custom_call.1} parent=15 // pred_region
          %p288 = scmp.lt.s32.totalorder %s29, 1
          %s289 = scalar_select %p288, %s29, 1
          %s290 = scalar_lea.vmem %s2, %s289
        $region28: #{tpu_custom_call.1} parent=15 // pred_fallthru
          _
        // Predicated region
        $region29: #{tpu_custom_call.1} parent=15 // pred_check
          %p291 = pneg %p134
        $region30: #{tpu_custom_call.1} parent=15 // pred_check_branch
          %293 = sbr.rel (%p291) target = $region32
        $region31: #{tpu_custom_call.1} parent=15 // pred_region
          %s294 = sand.u32 %s124, 1
          %s295 = scalar_lea.sflag [#allocation3], %s294
          %s296 = sand.u32 %s124, 1
          %s297 = smul.addr %s296, 128
          %s298 = scalar_lea.vmem [#allocation2], %s297
          %s300 = ssub.s32 2048, 2048
          %301 = vsyncadd %s295, %s300
          %s302 = smul.addr %s29, 16
          %s303 = smul.addr %s302, 128
          %s304 = scalar_lea.hbm %s3, %s303
          %s305 = sshll.u32 %s298, 4
          %s306 = int_to_ptr.vmem [resolvable:$true] %s305
          %311 = dma.hbm_to_vmem [thread:$0]  %s304, 2048, %s306, %s295, 128, 128, 8
        $region32: #{tpu_custom_call.1} parent=15 // pred_fallthru
          _
        // Predicated region
        $region33: #{tpu_custom_call.1} parent=15 // pred_check
          %p312 = pneg %p160
        $region34: #{tpu_custom_call.1} parent=15 // pred_check_branch
          %314 = sbr.rel (%p312) target = $region36
        $region35: #{tpu_custom_call.1} parent=15 // pred_region
          %p315 = scmp.lt.s32.totalorder %s29, 1
          %s316 = scalar_select %p315, %s29, 1
          %s317 = scalar_lea.vmem %s4, %s316
        $region36: #{tpu_custom_call.1} parent=15 // pred_fallthru
          _
        // Predicated region
        $region37: #{tpu_custom_call.1} parent=15 // pred_check
          %p318 = pneg %p186
        $region38: #{tpu_custom_call.1} parent=15 // pred_check_branch
          %320 = sbr.rel (%p318) target = $region40
        $region39: #{tpu_custom_call.1} parent=15 // pred_region
          %s321 = sand.u32 %s176, 1
          %s322 = scalar_lea.sflag [#allocation6], %s321
          %s323 = sand.u32 %s176, 1
          %s324 = smul.addr %s323, 128
          %s325 = scalar_lea.vmem [#allocation5], %s324
          %s327 = ssub.s32 2048, 2048
          %328 = vsyncadd %s322, %s327
          %s329 = smul.addr %s29, 16
          %s330 = smul.addr %s329, 128
          %s331 = scalar_lea.hbm %s5, %s330
          %s332 = sshll.u32 %s325, 4
          %s333 = int_to_ptr.vmem [resolvable:$true] %s332
          %338 = dma.hbm_to_vmem [thread:$0]  %s331, 2048, %s333, %s322, 128, 128, 8
        $region40: #{tpu_custom_call.1} parent=15 // pred_fallthru
          _
        // Predicated region
        $region41: #{tpu_custom_call.1} parent=15 // pred_check
          %p339 = pneg %p212
        $region42: #{tpu_custom_call.1} parent=15 // pred_check_branch
          %341 = sbr.rel (%p339) target = $region44
        $region43: #{tpu_custom_call.1} parent=15 // pred_region
          %p342 = scmp.lt.s32.totalorder %s29, 1
          %s343 = scalar_select %p342, %s29, 1
          %s344 = scalar_lea.vmem %s6, %s343
        $region44: #{tpu_custom_call.1} parent=15 // pred_fallthru
          _
      $region16: #{tpu_custom_call.1} parent=5 // pred_fallthru
        _
      %p345 = scmp.le.s32.totalorder 1, %s22
      %p346 = scmp.lt.s32.totalorder %s22, 3
      %p347 = pnand %p345, %p346
      %p348 = pneg %p347
      // Predicated region
      $region45: #{tpu_custom_call.1} parent=5 // pred_check
        _
      $region46: #{tpu_custom_call.1} parent=5 // pred_check_branch
        %350 = sbr.rel (%p347) target = $region48
      $region47: #{tpu_custom_call.1} parent=5 // pred_region
        %s351 = ssub.s32 %s22, 1
        %s352 = sand.u32 %s127, 1
        %s353 = scalar_lea.sflag [#allocation3], %s352
        %s354 = sand.u32 %s127, 1
        %s355 = smul.addr %s354, 128
        %s356 = scalar_lea.vmem [#allocation2], %s355
        // Predicated region
        $region49: #{tpu_custom_call.1} parent=47 // pred_check
          %p357 = pneg %p140
        $region50: #{tpu_custom_call.1} parent=47 // pred_check_branch
          %359 = sbr.rel (%p357) target = $region52
        $region51: #{tpu_custom_call.1} parent=47 // pred_region
          %360 = dma.done %s353, 2048
        $region52: #{tpu_custom_call.1} parent=47 // pred_fallthru
          _
        %s361 = sand.u32 %s179, 1
        %s362 = scalar_lea.sflag [#allocation6], %s361
        %s363 = sand.u32 %s179, 1
        %s364 = smul.addr %s363, 128
        %s365 = scalar_lea.vmem [#allocation5], %s364
        // Predicated region
        $region53: #{tpu_custom_call.1} parent=47 // pred_check
          %p366 = pneg %p192
        $region54: #{tpu_custom_call.1} parent=47 // pred_check_branch
          %368 = sbr.rel (%p366) target = $region56
        $region55: #{tpu_custom_call.1} parent=47 // pred_region
          %369 = dma.done %s362, 2048
        $region56: #{tpu_custom_call.1} parent=47 // pred_fallthru
          _
        %s370 = smul.u32 2, %s32
        %p371 = scmp.lt.s32.totalorder %s31, 1
        %s372 = scalar_select %p371, %s31, 1
        %p373 = scmp.lt.s32.totalorder %s370, 1
        %s374 = scalar_select %p373, %s370, 1
        %s375 = smul.addr %s372, 2
        %s376 = sadd.s32 %s374, %s375
        %s377 = smul.addr %s376, 8
        %s378 = scalar_lea.vmem %s0, %s377
        %p379 = pneg %p62
        %p380 = pneg %p59
        %p381 = scmp.lt.s32.totalorder %s31, 1
        %s382 = scalar_select %p381, %s31, 1
        %s383 = smul.addr %s382, 8
        %s384 = scalar_lea.vmem %s1, %s383
        %p385 = pneg %p88
        %p386 = pneg %p85
        %p387 = scmp.lt.s32.totalorder %s31, 1
        %s388 = scalar_select %p387, %s31, 1
        %s389 = scalar_lea.vmem %s2, %s388
        %p390 = pneg %p114
        %p391 = pneg %p111
        %s392 = sand.u32 %s127, 1
        %s393 = scalar_lea.sflag [#allocation3], %s392
        %s394 = sand.u32 %s127, 1
        %s395 = smul.addr %s394, 128
        %s396 = scalar_lea.vmem [#allocation2], %s395
        %p397 = pneg %p140
        %p398 = pneg %p137
        %p399 = scmp.lt.s32.totalorder %s31, 1
        %s400 = scalar_select %p399, %s31, 1
        %s401 = scalar_lea.vmem %s4, %s400
        %p402 = pneg %p166
        %p403 = pneg %p163
        %s404 = sand.u32 %s179, 1
        %s405 = scalar_lea.sflag [#allocation6], %s404
        %s406 = sand.u32 %s179, 1
        %s407 = smul.addr %s406, 128
        %s408 = scalar_lea.vmem [#allocation5], %s407
        %p409 = pneg %p192
        %p410 = pneg %p189
        %p411 = scmp.lt.s32.totalorder %s31, 1
        %s412 = scalar_select %p411, %s31, 1
        %s413 = scalar_lea.vmem %s6, %s412
        %p414 = pneg %p218
        %p415 = pneg %p215
        %p416 = pneg %p246
        %p417 = pneg %p243
        %s418 = sand.u32 %s233, 1
        %s419 = scalar_lea.sflag [#allocation4], %s418
        %s420 = sand.u32 %s233, 1
        %s421 = smul.addr %s420, 16
        %s422 = scalar_lea.vmem [#allocation7], %s421
        %s423 = smul.u32 2, %s32
        %p424 = scmp.lt.s32.totalorder %s31, 1
        %s425 = scalar_select %p424, %s31, 1
        %p426 = scmp.lt.s32.totalorder %s423, 1
        %s427 = scalar_select %p426, %s423, 1
        %s428 = smul.addr %s425, 2
        %s429 = sadd.s32 %s427, %s428
        %s430 = smul.addr %s429, 8
        %s431 = scalar_lea.vmem %s0, %s430
        %s432 = smul.u32 2, %s32
        %p433 = scmp.lt.s32.totalorder %s31, 1
        %s434 = scalar_select %p433, %s31, 1
        %s435 = smul.addr %s434, 8
        %s436 = scalar_lea.vmem %s1, %s435
        %p437 = scmp.lt.s32.totalorder %s31, 1
        %s438 = scalar_select %p437, %s31, 1
        %s439 = scalar_lea.vmem %s2, %s438
        %p440 = scmp.lt.s32.totalorder %s31, 1
        %s441 = scalar_select %p440, %s31, 1
        %s442 = scalar_lea.vmem %s4, %s441
        %p443 = scmp.lt.s32.totalorder %s31, 1
        %s444 = scalar_select %p443, %s31, 1
        %s445 = scalar_lea.vmem %s6, %s444
        %s446 = smul.u32 2, %s32
        %v447 = vld [vmem:[%s431] sm:$0xff]
        %v448 = vld [vmem:[%s431 + $0x8] sm:$0xff]
        %v449 = vld [vmem:[%s436] sm:$0xff]
        %v450 = vld [vmem:[%s439] sm:$0x1]
        %v452 = vlaneseq
        %v453 = vshrl.u32 %v452, 7
        %v454 = vsub.s32 0, %v453
        %v455 = vrot.slane %v450, %v454
        %vm457 = vcmask 64512
        %v459 = vsel %vm457, %v447, 0
        %v462 = vsel %vm457, %v448, 0
        %464 = vmatprep.subr.mxu0 0.0
        %465 = vmatpush1.msra.mxu0 %v449
        %466 = vmatprep.subr.mxu0 0.0
        %467 = vmatpush1.msra.mxu0 0.0
        %468 = vmatprep.subr.mxu0 0.0
        %469 = vmatpush1.msra.mxu0 0.0
        %470 = vmatprep.subr.mxu0 0.0
        %471 = vmatpush1.msra.mxu0 0.0
        %472 = vmatprep.subr.mxu0 0.0
        %473 = vmatpush1.msra.mxu0 0.0
        %474 = vmatprep.subr.mxu0 0.0
        %475 = vmatpush1.msra.mxu0 0.0
        %476 = vmatprep.subr.mxu0 0.0
        %477 = vmatpush1.msra.mxu0 0.0
        %478 = vmatprep.subr.mxu0 0.0
        %479 = vmatpush1.msra.mxu0 0.0
        %480 = vmatprep.subr.mxu0 0.0
        %481 = vmatpush1.msra.mxu0 0.0
        %482 = vmatprep.subr.mxu0 0.0
        %483 = vmatpush1.msra.mxu0 0.0
        %484 = vmatprep.subr.mxu0 0.0
        %485 = vmatpush1.msra.mxu0 0.0
        %486 = vmatprep.subr.mxu0 0.0
        %487 = vmatpush1.msra.mxu0 0.0
        %488 = vmatprep.subr.mxu0 0.0
        %489 = vmatpush1.msra.mxu0 0.0
        %490 = vmatprep.subr.mxu0 0.0
        %491 = vmatpush1.msra.mxu0 0.0
        %492 = vmatprep.subr.mxu0 0.0
        %493 = vmatpush1.msra.mxu0 0.0
        %494 = vmatprep.subr.mxu0 0.0
        %495 = vmatpush1.msra.mxu0 0.0
        %496 = vmatprep.subr.mxu0 0.0
        %497 = vmatpush1.msra.mxu0 0.0
        %498 = vmatprep.subr.mxu0 0.0
        %499 = vmatpush1.msra.mxu0 0.0
        %500 = vmatprep.subr.mxu0 0.0
        %501 = vmatpush1.msra.mxu0 0.0
        %502 = vmatprep.subr.mxu0 0.0
        %503 = vmatpush1.msra.mxu0 0.0
        %504 = vmatprep.subr.mxu0 0.0
        %505 = vmatpush1.msra.mxu0 0.0
        %506 = vmatprep.subr.mxu0 0.0
        %507 = vmatpush1.msra.mxu0 0.0
        %508 = vmatprep.subr.mxu0 0.0
        %509 = vmatpush1.msra.mxu0 0.0
        %510 = vmatprep.subr.mxu0 0.0
        %511 = vmatpush1.msra.mxu0 0.0
        %512 = vmatprep.subr.mxu0 0.0
        %513 = vmatpush1.msra.mxu0 0.0
        %514 = vmatprep.subr.mxu0 0.0
        %515 = vmatpush1.msra.mxu0 0.0
        %516 = vmatprep.subr.mxu0 0.0
        %517 = vmatpush1.msra.mxu0 0.0
        %518 = vmatprep.subr.mxu0 0.0
        %519 = vmatpush1.msra.mxu0 0.0
        %520 = vmatprep.subr.mxu0 0.0
        %521 = vmatpush1.msra.mxu0 0.0
        %522 = vmatprep.subr.mxu0 0.0
        %523 = vmatpush1.msra.mxu0 0.0
        %524 = vmatprep.subr.mxu0 0.0
        %525 = vmatpush1.msra.mxu0 0.0
        %526 = vmatprep.subr.mxu0 0.0
        %527 = vmatpush1.msra.mxu0 0.0
        %528 = vmatprep.mubr.f32.mxu0 0.0
        %529 = vmatmul.mubr.f32.gmra.mrb[0].mxu0 %v459
        %v530 = vpop.f32.mrb[0].mxu0
        %v531 = vadd.f32 %v455, %v530
        %v532 = vpop.f32.mrb[0].mxu0
        %533 = vmatprep.mubr.f32.mxu0 0.0
        %534 = vmatmul.mubr.f32.gmra.mrb[0].mxu0 %v462
        %v535 = vpop.f32.mrb[0].mxu0
        %v536 = vadd.f32 %v455, %v535
        %v537 = vpop.f32.mrb[0].mxu0
        %538 = vdwg.mxu0
        %v539 = vmax.f32 %v531, 0.0
        %v540 = vmax.f32 %v536, 0.0
        %v541 = vld [vmem:[%s356] sm:$0xff]
        %v542 = vld [vmem:[%s356 + $0x8] sm:$0xff]
        %v543 = vld [vmem:[%s356 + $0x10] sm:$0xff]
        %v544 = vld [vmem:[%s356 + $0x18] sm:$0xff]
        %v545 = vld [vmem:[%s356 + $0x20] sm:$0xff]
        %v546 = vld [vmem:[%s356 + $0x28] sm:$0xff]
        %v547 = vld [vmem:[%s356 + $0x30] sm:$0xff]
        %v548 = vld [vmem:[%s356 + $0x38] sm:$0xff]
        %v549 = vld [vmem:[%s356 + $0x40] sm:$0xff]
        %v550 = vld [vmem:[%s356 + $0x48] sm:$0xff]
        %v551 = vld [vmem:[%s356 + $0x50] sm:$0xff]
        %v552 = vld [vmem:[%s356 + $0x58] sm:$0xff]
        %v553 = vld [vmem:[%s356 + $0x60] sm:$0xff]
        %v554 = vld [vmem:[%s356 + $0x68] sm:$0xff]
        %v555 = vld [vmem:[%s356 + $0x70] sm:$0xff]
        %v556 = vld [vmem:[%s356 + $0x78] sm:$0xff]
        %v557 = vld [vmem:[%s442] sm:$0x1]
        %v559 = vlaneseq
        %v560 = vshrl.u32 %v559, 7
        %v561 = vsub.s32 0, %v560
        %v562 = vrot.slane %v557, %v561
        %564 = vmatprep.subr.mxu0 0.0
        %565 = vmatpush1.msra.mxu0 %v541
        %566 = vmatprep.subr.mxu0 0.0
        %567 = vmatpush1.msra.mxu0 %v542
        %568 = vmatprep.subr.mxu0 0.0
        %569 = vmatpush1.msra.mxu0 %v543
        %570 = vmatprep.subr.mxu0 0.0
        %571 = vmatpush1.msra.mxu0 %v544
        %572 = vmatprep.subr.mxu0 0.0
        %573 = vmatpush1.msra.mxu0 %v545
        %574 = vmatprep.subr.mxu0 0.0
        %575 = vmatpush1.msra.mxu0 %v546
        %576 = vmatprep.subr.mxu0 0.0
        %577 = vmatpush1.msra.mxu0 %v547
        %578 = vmatprep.subr.mxu0 0.0
        %579 = vmatpush1.msra.mxu0 %v548
        %580 = vmatprep.subr.mxu0 0.0
        %581 = vmatpush1.msra.mxu0 %v549
        %582 = vmatprep.subr.mxu0 0.0
        %583 = vmatpush1.msra.mxu0 %v550
        %584 = vmatprep.subr.mxu0 0.0
        %585 = vmatpush1.msra.mxu0 %v551
        %586 = vmatprep.subr.mxu0 0.0
        %587 = vmatpush1.msra.mxu0 %v552
        %588 = vmatprep.subr.mxu0 0.0
        %589 = vmatpush1.msra.mxu0 %v553
        %590 = vmatprep.subr.mxu0 0.0
        %591 = vmatpush1.msra.mxu0 %v554
        %592 = vmatprep.subr.mxu0 0.0
        %593 = vmatpush1.msra.mxu0 %v555
        %594 = vmatprep.subr.mxu0 0.0
        %595 = vmatpush1.msra.mxu0 %v556
        %596 = vmatprep.subr.mxu0 0.0
        %597 = vmatpush1.msra.mxu0 0.0
        %598 = vmatprep.subr.mxu0 0.0
        %599 = vmatpush1.msra.mxu0 0.0
        %600 = vmatprep.subr.mxu0 0.0
        %601 = vmatpush1.msra.mxu0 0.0
        %602 = vmatprep.subr.mxu0 0.0
        %603 = vmatpush1.msra.mxu0 0.0
        %604 = vmatprep.subr.mxu0 0.0
        %605 = vmatpush1.msra.mxu0 0.0
        %606 = vmatprep.subr.mxu0 0.0
        %607 = vmatpush1.msra.mxu0 0.0
        %608 = vmatprep.subr.mxu0 0.0
        %609 = vmatpush1.msra.mxu0 0.0
        %610 = vmatprep.subr.mxu0 0.0
        %611 = vmatpush1.msra.mxu0 0.0
        %612 = vmatprep.subr.mxu0 0.0
        %613 = vmatpush1.msra.mxu0 0.0
        %614 = vmatprep.subr.mxu0 0.0
        %615 = vmatpush1.msra.mxu0 0.0
        %616 = vmatprep.subr.mxu0 0.0
        %617 = vmatpush1.msra.mxu0 0.0
        %618 = vmatprep.subr.mxu0 0.0
        %619 = vmatpush1.msra.mxu0 0.0
        %620 = vmatprep.subr.mxu0 0.0
        %621 = vmatpush1.msra.mxu0 0.0
        %622 = vmatprep.subr.mxu0 0.0
        %623 = vmatpush1.msra.mxu0 0.0
        %624 = vmatprep.subr.mxu0 0.0
        %625 = vmatpush1.msra.mxu0 0.0
        %626 = vmatprep.subr.mxu0 0.0
        %627 = vmatpush1.msra.mxu0 0.0
        %628 = vmatprep.mubr.f32.mxu0 0.0
        %629 = vmatmul.mubr.f32.gmra.mrb[0].mxu0 %v539
        %v630 = vpop.f32.mrb[0].mxu0
        %v631 = vadd.f32 %v562, %v630
        %v632 = vpop.f32.mrb[0].mxu0
        %633 = vmatprep.mubr.f32.mxu0 0.0
        %634 = vmatmul.mubr.f32.gmra.mrb[0].mxu0 %v540
        %v635 = vpop.f32.mrb[0].mxu0
        %v636 = vadd.f32 %v562, %v635
        %v637 = vpop.f32.mrb[0].mxu0
        %638 = vdwg.mxu0
        %v639 = vmax.f32 %v631, 0.0
        %v640 = vmax.f32 %v636, 0.0
        %v641 = vld [vmem:[%s365] sm:$0xff]
        %v642 = vld [vmem:[%s365 + $0x8] sm:$0xff]
        %v643 = vld [vmem:[%s365 + $0x10] sm:$0xff]
        %v644 = vld [vmem:[%s365 + $0x18] sm:$0xff]
        %v645 = vld [vmem:[%s365 + $0x20] sm:$0xff]
        %v646 = vld [vmem:[%s365 + $0x28] sm:$0xff]
        %v647 = vld [vmem:[%s365 + $0x30] sm:$0xff]
        %v648 = vld [vmem:[%s365 + $0x38] sm:$0xff]
        %v649 = vld [vmem:[%s365 + $0x40] sm:$0xff]
        %v650 = vld [vmem:[%s365 + $0x48] sm:$0xff]
        %v651 = vld [vmem:[%s365 + $0x50] sm:$0xff]
        %v652 = vld [vmem:[%s365 + $0x58] sm:$0xff]
        %v653 = vld [vmem:[%s365 + $0x60] sm:$0xff]
        %v654 = vld [vmem:[%s365 + $0x68] sm:$0xff]
        %v655 = vld [vmem:[%s365 + $0x70] sm:$0xff]
        %v656 = vld [vmem:[%s365 + $0x78] sm:$0xff]
        %v657 = vld [vmem:[%s445] sm:$0x1]
        %v659 = vlaneseq
        %v660 = vshrl.u32 %v659, 7
        %v661 = vsub.s32 0, %v660
        %v662 = vrot.slane %v657, %v661
        %664 = vmatprep.subr.mxu0 0.0
        %665 = vmatpush1.msra.mxu0 %v641
        %666 = vmatprep.subr.mxu0 0.0
        %667 = vmatpush1.msra.mxu0 %v642
        %668 = vmatprep.subr.mxu0 0.0
        %669 = vmatpush1.msra.mxu0 %v643
        %670 = vmatprep.subr.mxu0 0.0
        %671 = vmatpush1.msra.mxu0 %v644
        %672 = vmatprep.subr.mxu0 0.0
        %673 = vmatpush1.msra.mxu0 %v645
        %674 = vmatprep.subr.mxu0 0.0
        %675 = vmatpush1.msra.mxu0 %v646
        %676 = vmatprep.subr.mxu0 0.0
        %677 = vmatpush1.msra.mxu0 %v647
        %678 = vmatprep.subr.mxu0 0.0
        %679 = vmatpush1.msra.mxu0 %v648
        %680 = vmatprep.subr.mxu0 0.0
        %681 = vmatpush1.msra.mxu0 %v649
        %682 = vmatprep.subr.mxu0 0.0
        %683 = vmatpush1.msra.mxu0 %v650
        %684 = vmatprep.subr.mxu0 0.0
        %685 = vmatpush1.msra.mxu0 %v651
        %686 = vmatprep.subr.mxu0 0.0
        %687 = vmatpush1.msra.mxu0 %v652
        %688 = vmatprep.subr.mxu0 0.0
        %689 = vmatpush1.msra.mxu0 %v653
        %690 = vmatprep.subr.mxu0 0.0
        %691 = vmatpush1.msra.mxu0 %v654
        %692 = vmatprep.subr.mxu0 0.0
        %693 = vmatpush1.msra.mxu0 %v655
        %694 = vmatprep.subr.mxu0 0.0
        %695 = vmatpush1.msra.mxu0 %v656
        %696 = vmatprep.subr.mxu0 0.0
        %697 = vmatpush1.msra.mxu0 0.0
        %698 = vmatprep.subr.mxu0 0.0
        %699 = vmatpush1.msra.mxu0 0.0
        %700 = vmatprep.subr.mxu0 0.0
        %701 = vmatpush1.msra.mxu0 0.0
        %702 = vmatprep.subr.mxu0 0.0
        %703 = vmatpush1.msra.mxu0 0.0
        %704 = vmatprep.subr.mxu0 0.0
        %705 = vmatpush1.msra.mxu0 0.0
        %706 = vmatprep.subr.mxu0 0.0
        %707 = vmatpush1.msra.mxu0 0.0
        %708 = vmatprep.subr.mxu0 0.0
        %709 = vmatpush1.msra.mxu0 0.0
        %710 = vmatprep.subr.mxu0 0.0
        %711 = vmatpush1.msra.mxu0 0.0
        %712 = vmatprep.subr.mxu0 0.0
        %713 = vmatpush1.msra.mxu0 0.0
        %714 = vmatprep.subr.mxu0 0.0
        %715 = vmatpush1.msra.mxu0 0.0
        %716 = vmatprep.subr.mxu0 0.0
        %717 = vmatpush1.msra.mxu0 0.0
        %718 = vmatprep.subr.mxu0 0.0
        %719 = vmatpush1.msra.mxu0 0.0
        %720 = vmatprep.subr.mxu0 0.0
        %721 = vmatpush1.msra.mxu0 0.0
        %722 = vmatprep.subr.mxu0 0.0
        %723 = vmatpush1.msra.mxu0 0.0
        %724 = vmatprep.subr.mxu0 0.0
        %725 = vmatpush1.msra.mxu0 0.0
        %726 = vmatprep.subr.mxu0 0.0
        %727 = vmatpush1.msra.mxu0 0.0
        %728 = vmatprep.mubr.f32.mxu0 0.0
        %729 = vmatmul.mubr.f32.gmra.mrb[0].mxu0 %v639
        %v730 = vpop.f32.mrb[0].mxu0
        %v731 = vadd.f32 %v662, %v730
        %v732 = vpop.f32.mrb[0].mxu0
        %733 = vmatprep.mubr.f32.mxu0 0.0
        %734 = vmatmul.mubr.f32.gmra.mrb[0].mxu0 %v640
        %v735 = vpop.f32.mrb[0].mxu0
        %v736 = vadd.f32 %v662, %v735
        %v737 = vpop.f32.mrb[0].mxu0
        %738 = vdwg.mxu0
        %739 = vadd.xlane.f32.xlu0 %v731
        %v740 = vpop.xlane.xlu0 %739
        %741 = vadd.xlane.f32.xlu0 %v736
        %v742 = vpop.xlane.xlu0 %741
        %v743 = vsub.f32 %v740, %v731
        %v744 = vsub.f32 %v742, %v736
        %v745 = vmul.f32 %v743, 0.25
        %v746 = vmul.f32 %v744, 0.25
        %v747 = vsub.f32 %v731, %v745
        %v748 = vsub.f32 %v736, %v746
        %750 = vset.pattern.permute.xlu0 0
        %751 = vperm.xlu0 %750, %v747
        %v752 = vpop.permute.xlu0 %751
        %755 = vset.pattern.permute.xlu0 0
        %756 = vperm.xlu0 %755, %v748
        %v757 = vpop.permute.xlu0 %756
        %v759 = vadd.f32 %v731, %v752
        %v760 = vadd.f32 %v736, %v757
        %761 = vst [vmem:[%s422] sm:$0xff] %v759
        %762 = vst [vmem:[%s422 + $0x8] sm:$0xff] %v760
        %s763 = sand.u32 %s233, 1
        %s764 = scalar_lea.sflag [#allocation4], %s763
        %s765 = sand.u32 %s233, 1
        %s766 = smul.addr %s765, 16
        %s767 = scalar_lea.vmem [#allocation7], %s766
        // Predicated region
        $region57: #{tpu_custom_call.1} parent=47 // pred_check
          %p768 = pneg %p243
        $region58: #{tpu_custom_call.1} parent=47 // pred_check_branch
          %770 = sbr.rel (%p768) target = $region60
        $region59: #{tpu_custom_call.1} parent=47 // pred_region
          %s771 = smul.u32 2, %s32
          %s773 = ssub.s32 256, 256
          %774 = vsyncadd %s764, %s773
          %s775 = smul.addr %s31, 2
          %s776 = sadd.s32 %s771, %s775
          %s777 = smul.addr %s776, 128
          %s778 = scalar_lea.hbm %s7, %s777
          %s779 = sshll.u32 %s767, 4
          %s780 = int_to_ptr.vmem [resolvable:$true] %s779
          %785 = dma.vmem_to_hbm [thread:$0]  %s780, 256, %s778, %s764, 128, 128, 8
        $region60: #{tpu_custom_call.1} parent=47 // pred_fallthru
          _
      $region48: #{tpu_custom_call.1} parent=5 // pred_fallthru
        _
      %p786 = scmp.le.s32.totalorder 2, %s22
      // Predicated region
      $region61: #{tpu_custom_call.1} parent=5 // pred_check
        %p787 = pneg %p786
      $region62: #{tpu_custom_call.1} parent=5 // pred_check_branch
        %789 = sbr.rel (%p787) target = $region64
      $region63: #{tpu_custom_call.1} parent=5 // pred_region
        %s790 = ssub.s32 %s22, 2
        // Predicated region
        $region65: #{tpu_custom_call.1} parent=63 // pred_check
          %p791 = pneg %p249
        $region66: #{tpu_custom_call.1} parent=63 // pred_check_branch
          %793 = sbr.rel (%p791) target = $region68
        $region67: #{tpu_custom_call.1} parent=63 // pred_region
          %s794 = sand.u32 %s234, 1
          %s795 = scalar_lea.sflag [#allocation4], %s794
          %s796 = sand.u32 %s234, 1
          %s797 = smul.addr %s796, 16
          %s798 = scalar_lea.vmem [#allocation7], %s797
          %799 = dma.done %s795, 256
        $region68: #{tpu_custom_call.1} parent=63 // pred_fallthru
          _
      $region64: #{tpu_custom_call.1} parent=5 // pred_fallthru
        _
    $region6: #{tpu_custom_call.1} parent=1 // loop_footer
      %s26 = sadd.s32 1, %s22
    $region7: #{tpu_custom_call.1} parent=1 // loop_footer_branch
      %21 = sbr.rel target = $region3
    $region8: #{tpu_custom_call.1} parent=1 // loop_exit
      _
    %800 = vsyncpa [#allocation3], 1
    %s801 = scalar_lea.sflag [#allocation3], 1
    %802 = vsyncpa %s801, 1
    %803 = vsyncpa [#allocation6], 1
    %s804 = scalar_lea.sflag [#allocation6], 1
    %805 = vsyncpa %s804, 1
    %806 = vsyncpa [#allocation4], 1
    %s807 = scalar_lea.sflag [#allocation4], 1
    %808 = vsyncpa %s807, 1

</llo_original>
